<compile_context>
chip_gen: v7x
topology: tpu7x:2x2x1
jax: 0.10.0
libtpu: 0.0.40
codegen_flags: <defaults>
</compile_context>

<pallas_src>
import jax
import jax.numpy as jnp
from jax.experimental import pallas as pl
from jax.experimental.pallas import tpu as pltpu

D_MODEL = 32
D_FF = 256
EPS = 1e-6
MAX_TILE_M = 8192        # rows per grid step (multiple of 256); sweepable


def _round_up(x, m):
    return (x + m - 1) // m * m


def _choose_tile(M, max_tile):
    """Row tile: multiple of 256 (full MXU LHS pushes), <= max_tile, and a
    grid of >= 2 (even when possible) so v7x's second TensorCore gets work."""
    if M <= 2 * 256:
        # Too small to split usefully; one tile (second-minor dim mult of 8).
        return min(_round_up(M, 8), max_tile)
    pairs = -(-M // (2 * max_tile))                     # ceil: groups of 2 steps
    return min(max_tile, _round_up(-(-M // (2 * pairs)), 256))


def _make_kernel(approx_recip):
    def feedforward_kernel(x_ref, w1_ref, b1_ref, w2_ref, b2_ref,
                           gamma_ref, beta_ref, o_ref):
        x = x_ref[...]                                        # (TM, D) f32

        # linear1 + ReLU (dropout p=0.0 -> identity).
        # MXU runs in the weights' dtype (bf16 on the fast path), f32 accumulate.
        h = jnp.dot(x.astype(w1_ref.dtype), w1_ref[...],
                    preferred_element_type=jnp.float32)
        h = jnp.maximum(h + b1_ref[...], 0.0)                 # (TM, D_FF) f32

        # linear2
        y = jnp.dot(h.astype(w2_ref.dtype), w2_ref[...],
                    preferred_element_type=jnp.float32)
        y = y + b2_ref[...]                                   # (TM, D) f32

        # residual + LayerNorm (unbiased std, eps added to std, as in module).
        z = y + x
        n = z.shape[-1]
        mean = jnp.sum(z, axis=-1, keepdims=True) * (1.0 / n)
        zc = z - mean
        var = jnp.sum(zc * zc, axis=-1, keepdims=True) * (1.0 / (n - 1))  # two-pass, unbiased
        denom = jnp.sqrt(var) + EPS
        if approx_recip:
            norm = zc * pl.reciprocal(denom, approx=True)     # EUP slot, ~free
        else:
            norm = zc / denom                                 # exact baseline
        o_ref[...] = gamma_ref[...] * norm + beta_ref[...]

    return feedforward_kernel


def feedforward(x, w1, b1, w2, b2, gamma, beta, *,
                tile_m=MAX_TILE_M, use_bf16=True):
    B, S, D = x.shape
    assert D == D_MODEL
    M = B * S
    x2d = x.reshape(M, D).astype(jnp.float32)

    tile_m = max(256, _round_up(tile_m, 256))
    tm = _choose_tile(M, tile_m)
    grid = (pl.cdiv(M, tm),)                 # partial last block handled by Pallas

    mm_dtype = jnp.bfloat16 if use_bf16 else jnp.float32
    w1c = w1.astype(mm_dtype)
    w2c = w2.astype(mm_dtype)
    wbytes = (w1c.size + w2c.size) * jnp.dtype(mm_dtype).itemsize

    # VMEM sizing from the actual tile footprint (+25% margin), clamped.
    tile_bytes = (
        2 * tm * D_MODEL * 4            # x, double-buffered
        + 2 * tm * D_MODEL * 4          # out, double-buffered
        + tm * D_FF * 4                 # h (f32 accum)
        + tm * D_FF * 2                 # h cast for linear2
        + 6 * tm * D_MODEL * 4          # epilogue temporaries (y, z, zc, ...)
        + wbytes + (D_FF + 3 * D_MODEL) * 4
    )
    vmem_limit = min(max(int(tile_bytes * 1.25) + (2 << 20), 8 << 20), 48 << 20)

    cost = pl.CostEstimate(
        flops=int(4 * M * D_MODEL * D_FF),                 # two matmuls
        transcendentals=int(2 * M),                        # sqrt + recip per row
        bytes_accessed=int(2 * M * D_MODEL * 4 + wbytes + (D_FF + 3 * D_MODEL) * 4),
    )

    out = pl.pallas_call(
        _make_kernel(approx_recip=use_bf16),
        out_shape=jax.ShapeDtypeStruct((M, D_MODEL), jnp.float32),
        grid=grid,
        in_specs=[
            pl.BlockSpec((tm, D_MODEL), lambda i: (i, 0)),       # x: tiled rows
            pl.BlockSpec((D_MODEL, D_FF), lambda i: (0, 0)),     # w1: resident
            pl.BlockSpec((1, D_FF), lambda i: (0, 0)),           # b1
            pl.BlockSpec((D_FF, D_MODEL), lambda i: (0, 0)),     # w2: resident
            pl.BlockSpec((1, D_MODEL), lambda i: (0, 0)),        # b2
            pl.BlockSpec((1, D_MODEL), lambda i: (0, 0)),        # gamma
            pl.BlockSpec((1, D_MODEL), lambda i: (0, 0)),        # beta
        ],
        out_specs=pl.BlockSpec((tm, D_MODEL), lambda i: (i, 0)),
        compiler_params=pltpu.CompilerParams(
            dimension_semantics=("parallel",),        # v7x: shard rows over 2 TCs
            vmem_limit_bytes=vmem_limit,
        ),
        cost_estimate=cost,
    )(x2d, w1c, b1.reshape(1, D_FF).astype(jnp.float32),
      w2c, b2.reshape(1, D_MODEL).astype(jnp.float32),
      gamma.reshape(1, D_MODEL).astype(jnp.float32),
      beta.reshape(1, D_MODEL).astype(jnp.float32))

    return out.reshape(B, S, D)


def init_params(key, d_model, d_ff):
    # Deterministic init mimicking nn.Linear defaults.
    k1, k2, k3, k4 = jax.random.split(key, 4)
    bound1 = 1.0 / jnp.sqrt(d_model)
    bound2 = 1.0 / jnp.sqrt(d_ff)
    w1 = jax.random.uniform(k1, (d_model, d_ff), jnp.float32, -bound1, bound1)
    b1 = jax.random.uniform(k2, (d_ff,), jnp.float32, -bound1, bound1)
    w2 = jax.random.uniform(k3, (d_ff, d_model), jnp.float32, -bound2, bound2)
    b2 = jax.random.uniform(k4, (d_model,), jnp.float32, -bound2, bound2)
    gamma = jnp.ones((d_model,), jnp.float32)
    beta = jnp.zeros((d_model,), jnp.float32)
    return w1, b1, w2, b2, gamma, beta


if __name__ == "__main__":
    key = jax.random.PRNGKey(0)
    kx, kp = jax.random.split(key)

    B, S = 2, 8
    x = jax.random.normal(kx, (B, S, D_MODEL), jnp.float32)
    w1, b1, w2, b2, gamma, beta = init_params(kp, D_MODEL, D_FF)

    out_bf16 = feedforward(x, w1, b1, w2, b2, gamma, beta)                 # fast path
    out_f32 = feedforward(x, w1, b1, w2, b2, gamma, beta, use_bf16=False)  # exact path
    jax.block_until_ready(out_bf16)
    jax.block_until_ready(out_f32)

    # Reference in plain JAX f32 (same math as the PyTorch module).
    h = jnp.maximum(x @ w1 + b1, 0.0)
    y = h @ w2 + b2
    z = y + x
    mean = jnp.mean(z, axis=-1, keepdims=True)
    std = jnp.sqrt(jnp.sum((z - mean) ** 2, axis=-1, keepdims=True) / (D_MODEL - 1))
    ref = gamma * (z - mean) / (std + EPS) + beta

    assert jnp.allclose(out_f32, ref, atol=5e-3, rtol=5e-3), "f32 path mismatch"
    assert jnp.allclose(out_bf16, ref, atol=2e-2, rtol=2e-2), "bf16 path mismatch"

    print("KERNEL_OK")
</pallas_src>

<mosaic_0001>
module attributes {stable_mosaic.version = 11 : i64} {
  func.func @feedforward_kernel(%arg0: i32, %arg1: memref<16x32xf32, #tpu.memory_space<vmem>>, %arg2: memref<32x256xbf16, #tpu.memory_space<vmem>>, %arg3: memref<1x256xf32, #tpu.memory_space<vmem>>, %arg4: memref<256x32xbf16, #tpu.memory_space<vmem>>, %arg5: memref<1x32xf32, #tpu.memory_space<vmem>>, %arg6: memref<1x32xf32, #tpu.memory_space<vmem>>, %arg7: memref<1x32xf32, #tpu.memory_space<vmem>>, %arg8: memref<16x32xf32, #tpu.memory_space<vmem>>) attributes {dimension_semantics = [#tpu.dimension_semantics<parallel>], iteration_bounds = array<i64: 1>, scalar_prefetch = 0 : i64, scratch_operands = 0 : i64, tpu.core_type = #tpu.core_type<tc>, window_params = [{transform_indices = @transform_0, window_bounds = array<i64: 16, 32>}, {pipeline_mode = #tpu.pipeline_mode<synchronous>, transform_indices = @transform_1, window_bounds = array<i64: 32, 256>}, {pipeline_mode = #tpu.pipeline_mode<synchronous>, transform_indices = @transform_2, window_bounds = array<i64: 1, 256>}, {pipeline_mode = #tpu.pipeline_mode<synchronous>, transform_indices = @transform_3, window_bounds = array<i64: 256, 32>}, {pipeline_mode = #tpu.pipeline_mode<synchronous>, transform_indices = @transform_4, window_bounds = array<i64: 1, 32>}, {pipeline_mode = #tpu.pipeline_mode<synchronous>, transform_indices = @transform_5, window_bounds = array<i64: 1, 32>}, {pipeline_mode = #tpu.pipeline_mode<synchronous>, transform_indices = @transform_6, window_bounds = array<i64: 1, 32>}, {transform_indices = @transform_7, window_bounds = array<i64: 16, 32>}]} {
    %c0 = arith.constant 0 : index
    %c0_0 = arith.constant 0 : index
    %0 = vector.load %arg1[%c0, %c0_0] : memref<16x32xf32, #tpu.memory_space<vmem>>, vector<16x32xf32>
    %1 = arith.truncf %0 : vector<16x32xf32> to vector<16x32xbf16>
    %c0_1 = arith.constant 0 : index
    %c0_2 = arith.constant 0 : index
    %2 = vector.load %arg2[%c0_1, %c0_2] : memref<32x256xbf16, #tpu.memory_space<vmem>>, vector<32x256xbf16>
    %cst = arith.constant dense<0.000000e+00> : vector<16x256xf32>
    %3 = tpu.matmul %1, %2, %cst {dimension_numbers = #tpu.dot_dimension_numbers<[1], [0], [0], [1], [0, 0, 1, 1], [], []>} : vector<16x32xbf16>, vector<32x256xbf16>, vector<16x256xf32> -> vector<16x256xf32>
    %c0_3 = arith.constant 0 : index
    %c0_4 = arith.constant 0 : index
    %4 = vector.load %arg3[%c0_3, %c0_4] : memref<1x256xf32, #tpu.memory_space<vmem>>, vector<1x256xf32>
    %5 = vector.broadcast %4 : vector<1x256xf32> to vector<16x256xf32>
    %6 = arith.addf %3, %5 : vector<16x256xf32>
    %cst_5 = arith.constant 0.000000e+00 : f32
    %7 = vector.broadcast %cst_5 : f32 to vector<16x256xf32>
    %8 = arith.maximumf %6, %7 : vector<16x256xf32>
    %9 = arith.truncf %8 : vector<16x256xf32> to vector<16x256xbf16>
    %c0_6 = arith.constant 0 : index
    %c0_7 = arith.constant 0 : index
    %10 = vector.load %arg4[%c0_6, %c0_7] : memref<256x32xbf16, #tpu.memory_space<vmem>>, vector<256x32xbf16>
    %cst_8 = arith.constant dense<0.000000e+00> : vector<16x32xf32>
    %11 = tpu.matmul %9, %10, %cst_8 {dimension_numbers = #tpu.dot_dimension_numbers<[1], [0], [0], [1], [0, 0, 1, 1], [], []>} : vector<16x256xbf16>, vector<256x32xbf16>, vector<16x32xf32> -> vector<16x32xf32>
    %c0_9 = arith.constant 0 : index
    %c0_10 = arith.constant 0 : index
    %12 = vector.load %arg5[%c0_9, %c0_10] : memref<1x32xf32, #tpu.memory_space<vmem>>, vector<1x32xf32>
    %13 = vector.broadcast %12 : vector<1x32xf32> to vector<16x32xf32>
    %14 = arith.addf %11, %13 : vector<16x32xf32>
    %15 = arith.addf %14, %0 : vector<16x32xf32>
    %cst_11 = arith.constant dense<0.000000e+00> : vector<16xf32>
    %16 = vector.multi_reduction <add>, %15, %cst_11 [1] : vector<16x32xf32> to vector<16xf32>
    %17 = vector.shape_cast %16 : vector<16xf32> to vector<16x1xf32>
    %cst_12 = arith.constant 3.125000e-02 : f32
    %18 = vector.broadcast %cst_12 : f32 to vector<16x1xf32>
    %19 = arith.mulf %17, %18 : vector<16x1xf32>
    %20 = vector.broadcast %19 : vector<16x1xf32> to vector<16x32xf32>
    %21 = arith.subf %15, %20 : vector<16x32xf32>
    %22 = arith.mulf %21, %21 : vector<16x32xf32>
    %cst_13 = arith.constant dense<0.000000e+00> : vector<16xf32>
    %23 = vector.multi_reduction <add>, %22, %cst_13 [1] : vector<16x32xf32> to vector<16xf32>
    %24 = vector.shape_cast %23 : vector<16xf32> to vector<16x1xf32>
    %cst_14 = arith.constant 0.0322580636 : f32
    %25 = vector.broadcast %cst_14 : f32 to vector<16x1xf32>
    %26 = arith.mulf %24, %25 : vector<16x1xf32>
    %27 = math.sqrt %26 : vector<16x1xf32>
    %cst_15 = arith.constant 9.99999997E-7 : f32
    %28 = vector.broadcast %cst_15 : f32 to vector<16x1xf32>
    %29 = arith.addf %27, %28 : vector<16x1xf32>
    %30 = tpu.reciprocal %29 {approx = true} : vector<16x1xf32> -> vector<16x1xf32>
    %31 = vector.broadcast %30 : vector<16x1xf32> to vector<16x32xf32>
    %32 = arith.mulf %21, %31 : vector<16x32xf32>
    %c0_16 = arith.constant 0 : index
    %c0_17 = arith.constant 0 : index
    %33 = vector.load %arg6[%c0_16, %c0_17] : memref<1x32xf32, #tpu.memory_space<vmem>>, vector<1x32xf32>
    %34 = vector.broadcast %33 : vector<1x32xf32> to vector<16x32xf32>
    %35 = arith.mulf %34, %32 : vector<16x32xf32>
    %c0_18 = arith.constant 0 : index
    %c0_19 = arith.constant 0 : index
    %36 = vector.load %arg7[%c0_18, %c0_19] : memref<1x32xf32, #tpu.memory_space<vmem>>, vector<1x32xf32>
    %37 = vector.broadcast %36 : vector<1x32xf32> to vector<16x32xf32>
    %38 = arith.addf %35, %37 : vector<16x32xf32>
    %c0_20 = arith.constant 0 : index
    %c0_21 = arith.constant 0 : index
    %39 = vector.load %arg8[%c0_20, %c0_21] : memref<16x32xf32, #tpu.memory_space<vmem>>, vector<16x32xf32>
    tpu.vector_store %arg8[%c0_20, %c0_21], %38 {strides = array<i32>} : memref<16x32xf32, #tpu.memory_space<vmem>>, vector<16x32xf32>,
    return
  }
  func.func @transform_0(%arg0: i32) -> (i32, i32) {
    %c0_i32 = arith.constant 0 : i32
    %c0_i32_0 = arith.constant 0 : i32
    return %arg0, %c0_i32 : i32, i32
  }
  func.func @transform_1(%arg0: i32) -> (i32, i32) {
    %c0_i32 = arith.constant 0 : i32
    %c0_i32_0 = arith.constant 0 : i32
    %c0_i32_1 = arith.constant 0 : i32
    return %c0_i32, %c0_i32_0 : i32, i32
  }
  func.func @transform_2(%arg0: i32) -> (i32, i32) {
    %c0_i32 = arith.constant 0 : i32
    %c0_i32_0 = arith.constant 0 : i32
    %c0_i32_1 = arith.constant 0 : i32
    return %c0_i32, %c0_i32_0 : i32, i32
  }
  func.func @transform_3(%arg0: i32) -> (i32, i32) {
    %c0_i32 = arith.constant 0 : i32
    %c0_i32_0 = arith.constant 0 : i32
    %c0_i32_1 = arith.constant 0 : i32
    return %c0_i32, %c0_i32_0 : i32, i32
  }
  func.func @transform_4(%arg0: i32) -> (i32, i32) {
    %c0_i32 = arith.constant 0 : i32
    %c0_i32_0 = arith.constant 0 : i32
    %c0_i32_1 = arith.constant 0 : i32
    return %c0_i32, %c0_i32_0 : i32, i32
  }
  func.func @transform_5(%arg0: i32) -> (i32, i32) {
    %c0_i32 = arith.constant 0 : i32
    %c0_i32_0 = arith.constant 0 : i32
    %c0_i32_1 = arith.constant 0 : i32
    return %c0_i32, %c0_i32_0 : i32, i32
  }
  func.func @transform_6(%arg0: i32) -> (i32, i32) {
    %c0_i32 = arith.constant 0 : i32
    %c0_i32_0 = arith.constant 0 : i32
    %c0_i32_1 = arith.constant 0 : i32
    return %c0_i32, %c0_i32_0 : i32, i32
  }
  func.func @transform_7(%arg0: i32) -> (i32, i32) {
    %c0_i32 = arith.constant 0 : i32
    %c0_i32_0 = arith.constant 0 : i32
    return %arg0, %c0_i32 : i32, i32
  }
}

</mosaic_0001>

<llo_original>
// kernel: tpu_custom_call.1
$region0: #{tpu_custom_call.1}
  #allocation0 [shape = 'u32[]', space=smem, size = 0x4, offset = 0x4, fixed_abs, tag = 'smem constant byte address 0x4 - core index']
  #allocation1 [shape = 'u32[144,128]{1,0:T(1,128)}', space=vmem, size = 0x12000, scoped, tag = 'internal scratch']
  %s0 = inlined_call_operand.vmem [shape: f32[16,32], index: 0, kind: input, shape index: {}]
  %s1 = inlined_call_operand.vmem [shape: bf16[32,256], index: 1, kind: input, shape index: {}]
  %s2 = inlined_call_operand.vmem [shape: f32[1,256], index: 2, kind: input, shape index: {}]
  %s3 = inlined_call_operand.vmem [shape: bf16[256,32], index: 3, kind: input, shape index: {}]
  %s4 = inlined_call_operand.vmem [shape: f32[1,32], index: 4, kind: input, shape index: {}]
  %s5 = inlined_call_operand.vmem [shape: f32[1,32], index: 5, kind: input, shape index: {}]
  %s6 = inlined_call_operand.vmem [shape: f32[1,32], index: 6, kind: input, shape index: {}]
  %s7 = inlined_call_operand.hbm [shape: f32[16,32], index: 7, kind: output, shape index: {}]
  %s8 = sld [smem:[#allocation0]]
  $region38: #{tpu_custom_call.1} parent=0
    _
  %s10 = ssub.s32 1, %s8
  %s11 = scalar_select 0, %s10, %s8
  $region1: #{tpu_custom_call.1} parent=0
    #allocation2 [shape = 'u8[8192]{0}', space=vmem, size = 0x2000, scoped, tag = 'output window, operand 0, single buffered']
    #allocation3 [shape = 's32[1]{0}', space=sflag, size = 0x4, scoped, tag = 'scoped memory for tpu_custom_call.1']
    %12 = vsyncpa [#allocation3], 0
    // Predicated region
    $region2: #{tpu_custom_call.1} parent=1 // pred_check
      _
    $region3: #{tpu_custom_call.1} parent=1 // pred_check_branch
      %14 = sbr.rel (0) target = $region5
    $region4: #{tpu_custom_call.1} parent=1 // pred_region
      _
    $region5: #{tpu_custom_call.1} parent=1 // pred_fallthru
      _
    // Predicated region
    $region6: #{tpu_custom_call.1} parent=1 // pred_check
      _
    $region7: #{tpu_custom_call.1} parent=1 // pred_check_branch
      %16 = sbr.rel (0) target = $region9
    $region8: #{tpu_custom_call.1} parent=1 // pred_region
      _
    $region9: #{tpu_custom_call.1} parent=1 // pred_fallthru
      _
    // Predicated region
    $region10: #{tpu_custom_call.1} parent=1 // pred_check
      _
    $region11: #{tpu_custom_call.1} parent=1 // pred_check_branch
      %18 = sbr.rel (0) target = $region13
    $region12: #{tpu_custom_call.1} parent=1 // pred_region
      _
    $region13: #{tpu_custom_call.1} parent=1 // pred_fallthru
      _
    // Predicated region
    $region14: #{tpu_custom_call.1} parent=1 // pred_check
      _
    $region15: #{tpu_custom_call.1} parent=1 // pred_check_branch
      %20 = sbr.rel (0) target = $region17
    $region16: #{tpu_custom_call.1} parent=1 // pred_region
      _
    $region17: #{tpu_custom_call.1} parent=1 // pred_fallthru
      _
    // Predicated region
    $region18: #{tpu_custom_call.1} parent=1 // pred_check
      _
    $region19: #{tpu_custom_call.1} parent=1 // pred_check_branch
      %22 = sbr.rel (0) target = $region21
    $region20: #{tpu_custom_call.1} parent=1 // pred_region
      _
    $region21: #{tpu_custom_call.1} parent=1 // pred_fallthru
      _
    // Predicated region
    $region22: #{tpu_custom_call.1} parent=1 // pred_check
      _
    $region23: #{tpu_custom_call.1} parent=1 // pred_check_branch
      %24 = sbr.rel (0) target = $region25
    $region24: #{tpu_custom_call.1} parent=1 // pred_region
      _
    $region25: #{tpu_custom_call.1} parent=1 // pred_fallthru
      _
    // Predicated region
    $region26: #{tpu_custom_call.1} parent=1 // pred_check
      _
    $region27: #{tpu_custom_call.1} parent=1 // pred_check_branch
      %26 = sbr.rel (0) target = $region29
    $region28: #{tpu_custom_call.1} parent=1 // pred_region
      _
    $region29: #{tpu_custom_call.1} parent=1 // pred_fallthru
      _
    %v28 = vld [vmem:[%s0] sm:$0xff]
    %v29 = vld [vmem:[%s0 + $0x8] sm:$0xff]
    %v30 = vpack.c.bf16 %v29, %v28
    %v31 = vld [vmem:[%s1] sm:$0xff]
    %v32 = vld [vmem:[%s1 + $0x8] sm:$0xff]
    %v33 = vld [vmem:[%s1 + $0x10] sm:$0xff]
    %v34 = vld [vmem:[%s1 + $0x18] sm:$0xff]
    %v35 = vld [vmem:[%s2] sm:$0x3]
    %v37 = vlaneseq
    %v38 = vshrl.u32 %v37, 7
    %v39 = vsub.s32 0, %v38
    %v40 = vrot.slane %v35, %v39
    %v41 = vlaneseq
    %v42 = vshrl.u32 %v41, 7
    %v43 = vsub.s32 1, %v42
    %v44 = vrot.slane %v35, %v43
    %v51 = vunpack.c.l.b16 %v31
    %v52 = vunpack.c.h.b16 %v31
    %v53 = vunpack.c.l.b16 %v32
    %v54 = vunpack.c.h.b16 %v32
    %v55 = vunpack.c.l.b16 %v33
    %v56 = vunpack.c.h.b16 %v33
    %v57 = vunpack.c.l.b16 %v34
    %v58 = vunpack.c.h.b16 %v34
    %v59 = vpack.c.b16 %v53, %v51
    %v60 = vpack.c.b16 %v54, %v52
    %v61 = vpack.c.b16 %v57, %v55
    %v62 = vpack.c.b16 %v58, %v56
    %vm67 = vcmask 261120
    %v69 = vsel %vm67, %v30, 0
    %71 = vmatprep.subr.bf16.mxu0 %v60
    %72 = vmatpush1.bf16.msra.mxu0 %v59
    %73 = vmatprep.subr.bf16.mxu0 %v62
    %74 = vmatpush1.bf16.msra.mxu0 %v61
    %75 = vmatprep.subr.bf16.mxu0 0
    %76 = vmatpush1.bf16.msra.mxu0 0
    %77 = vmatprep.subr.bf16.mxu0 0
    %78 = vmatpush1.bf16.msra.mxu0 0
    %79 = vmatprep.subr.bf16.mxu0 0
    %80 = vmatpush1.bf16.msra.mxu0 0
    %81 = vmatprep.subr.bf16.mxu0 0
    %82 = vmatpush1.bf16.msra.mxu0 0
    %83 = vmatprep.subr.bf16.mxu0 0
    %84 = vmatpush1.bf16.msra.mxu0 0
    %85 = vmatprep.subr.bf16.mxu0 0
    %86 = vmatpush1.bf16.msra.mxu0 0
    %87 = vmatprep.subr.bf16.mxu0 0
    %88 = vmatpush1.bf16.msra.mxu0 0
    %89 = vmatprep.subr.bf16.mxu0 0
    %90 = vmatpush1.bf16.msra.mxu0 0
    %91 = vmatprep.subr.bf16.mxu0 0
    %92 = vmatpush1.bf16.msra.mxu0 0
    %93 = vmatprep.subr.bf16.mxu0 0
    %94 = vmatpush1.bf16.msra.mxu0 0
    %95 = vmatprep.subr.bf16.mxu0 0
    %96 = vmatpush1.bf16.msra.mxu0 0
    %97 = vmatprep.subr.bf16.mxu0 0
    %98 = vmatpush1.bf16.msra.mxu0 0
    %99 = vmatprep.subr.bf16.mxu0 0
    %100 = vmatpush1.bf16.msra.mxu0 0
    %101 = vmatprep.subr.bf16.mxu0 0
    %102 = vmatpush1.bf16.msra.mxu0 0
    %103 = vmatprep.mubr.bf16.mxu0 0
    %104 = vmatmul.mubr.bf16.gmra.mrb[0].mxu0 %v69
    %v105 = vpop.f32.mrb[0].mxu0
    %v106 = vadd.f32 %v40, %v105
    %v107 = vpop.f32.mrb[0].mxu0
    %v108 = vadd.f32 %v44, %v107
    %v109 = vpop.f32.mrb[0].mxu0
    %v110 = vadd.f32 %v40, %v109
    %v111 = vpop.f32.mrb[0].mxu0
    %v112 = vadd.f32 %v44, %v111
    %113 = vdwg.mxu0
    %v114 = vmax.f32 %v106, 0.0
    %v115 = vmax.f32 %v108, 0.0
    %v116 = vmax.f32 %v110, 0.0
    %v117 = vmax.f32 %v112, 0.0
    %v118 = vpack.c.bf16 %v116, %v114
    %v119 = vpack.c.bf16 %v117, %v115
    %v120 = vld [vmem:[%s3] sm:$0xf]
    %v121 = vld [vmem:[%s3 + $0x4] sm:$0xf]
    %v122 = vld [vmem:[%s3 + $0x8] sm:$0xf]
    %v123 = vld [vmem:[%s3 + $0xc] sm:$0xf]
    %v124 = vld [vmem:[%s3 + $0x10] sm:$0xf]
    %v125 = vld [vmem:[%s3 + $0x14] sm:$0xf]
    %v126 = vld [vmem:[%s3 + $0x18] sm:$0xf]
    %v127 = vld [vmem:[%s3 + $0x1c] sm:$0xf]
    %v128 = vld [vmem:[%s3 + $0x20] sm:$0xf]
    %v129 = vld [vmem:[%s3 + $0x24] sm:$0xf]
    %v130 = vld [vmem:[%s3 + $0x28] sm:$0xf]
    %v131 = vld [vmem:[%s3 + $0x2c] sm:$0xf]
    %v132 = vld [vmem:[%s3 + $0x30] sm:$0xf]
    %v133 = vld [vmem:[%s3 + $0x34] sm:$0xf]
    %v134 = vld [vmem:[%s3 + $0x38] sm:$0xf]
    %v135 = vld [vmem:[%s3 + $0x3c] sm:$0xf]
    %v136 = vld [vmem:[%s3 + $0x40] sm:$0xf]
    %v137 = vld [vmem:[%s3 + $0x44] sm:$0xf]
    %v138 = vld [vmem:[%s3 + $0x48] sm:$0xf]
    %v139 = vld [vmem:[%s3 + $0x4c] sm:$0xf]
    %v140 = vld [vmem:[%s3 + $0x50] sm:$0xf]
    %v141 = vld [vmem:[%s3 + $0x54] sm:$0xf]
    %v142 = vld [vmem:[%s3 + $0x58] sm:$0xf]
    %v143 = vld [vmem:[%s3 + $0x5c] sm:$0xf]
    %v144 = vld [vmem:[%s3 + $0x60] sm:$0xf]
    %v145 = vld [vmem:[%s3 + $0x64] sm:$0xf]
    %v146 = vld [vmem:[%s3 + $0x68] sm:$0xf]
    %v147 = vld [vmem:[%s3 + $0x6c] sm:$0xf]
    %v148 = vld [vmem:[%s3 + $0x70] sm:$0xf]
    %v149 = vld [vmem:[%s3 + $0x74] sm:$0xf]
    %v150 = vld [vmem:[%s3 + $0x78] sm:$0xf]
    %v151 = vld [vmem:[%s3 + $0x7c] sm:$0xf]
    %v152 = vld [vmem:[%s4] sm:$0x1]
    %v154 = vlaneseq
    %v155 = vshrl.u32 %v154, 7
    %v156 = vsub.s32 0, %v155
    %v157 = vrot.slane %v152, %v156
    %v191 = vunpack.c.l.b16 %v120
    %v192 = vunpack.c.l.b16 %v121
    %v193 = vunpack.c.l.b16 %v122
    %v194 = vunpack.c.l.b16 %v123
    %v195 = vunpack.c.l.b16 %v124
    %v196 = vunpack.c.l.b16 %v125
    %v197 = vunpack.c.l.b16 %v126
    %v198 = vunpack.c.l.b16 %v127
    %v199 = vunpack.c.l.b16 %v128
    %v200 = vunpack.c.l.b16 %v129
    %v201 = vunpack.c.l.b16 %v130
    %v202 = vunpack.c.l.b16 %v131
    %v203 = vunpack.c.l.b16 %v132
    %v204 = vunpack.c.l.b16 %v133
    %v205 = vunpack.c.l.b16 %v134
    %v206 = vunpack.c.l.b16 %v135
    %v207 = vunpack.c.l.b16 %v136
    %v208 = vunpack.c.l.b16 %v137
    %v209 = vunpack.c.l.b16 %v138
    %v210 = vunpack.c.l.b16 %v139
    %v211 = vunpack.c.l.b16 %v140
    %v212 = vunpack.c.l.b16 %v141
    %v213 = vunpack.c.l.b16 %v142
    %v214 = vunpack.c.l.b16 %v143
    %v215 = vunpack.c.l.b16 %v144
    %v216 = vunpack.c.l.b16 %v145
    %v217 = vunpack.c.l.b16 %v146
    %v218 = vunpack.c.l.b16 %v147
    %v219 = vunpack.c.l.b16 %v148
    %v220 = vunpack.c.l.b16 %v149
    %v221 = vunpack.c.l.b16 %v150
    %v222 = vunpack.c.l.b16 %v151
    %v223 = vpack.c.b16 %v192, %v191
    %v224 = vpack.c.b16 %v194, %v193
    %v225 = vpack.c.b16 %v196, %v195
    %v226 = vpack.c.b16 %v198, %v197
    %v227 = vpack.c.b16 %v200, %v199
    %v228 = vpack.c.b16 %v202, %v201
    %v229 = vpack.c.b16 %v204, %v203
    %v230 = vpack.c.b16 %v206, %v205
    %v231 = vpack.c.b16 %v208, %v207
    %v232 = vpack.c.b16 %v210, %v209
    %v233 = vpack.c.b16 %v212, %v211
    %v234 = vpack.c.b16 %v214, %v213
    %v235 = vpack.c.b16 %v216, %v215
    %v236 = vpack.c.b16 %v218, %v217
    %v237 = vpack.c.b16 %v220, %v219
    %v238 = vpack.c.b16 %v222, %v221
    %255 = vmatprep.subr.bf16.mxu0 0
    %256 = vmatpush1.bf16.msra.mxu0 %v223
    %257 = vmatprep.subr.bf16.mxu0 0
    %258 = vmatpush1.bf16.msra.mxu0 %v224
    %259 = vmatprep.subr.bf16.mxu0 0
    %260 = vmatpush1.bf16.msra.mxu0 %v225
    %261 = vmatprep.subr.bf16.mxu0 0
    %262 = vmatpush1.bf16.msra.mxu0 %v226
    %263 = vmatprep.subr.bf16.mxu0 0
    %264 = vmatpush1.bf16.msra.mxu0 %v227
    %265 = vmatprep.subr.bf16.mxu0 0
    %266 = vmatpush1.bf16.msra.mxu0 %v228
    %267 = vmatprep.subr.bf16.mxu0 0
    %268 = vmatpush1.bf16.msra.mxu0 %v229
    %269 = vmatprep.subr.bf16.mxu0 0
    %270 = vmatpush1.bf16.msra.mxu0 %v230
    %271 = vmatprep.subr.bf16.mxu0 0
    %272 = vmatpush1.bf16.msra.mxu0 %v231
    %273 = vmatprep.subr.bf16.mxu0 0
    %274 = vmatpush1.bf16.msra.mxu0 %v232
    %275 = vmatprep.subr.bf16.mxu0 0
    %276 = vmatpush1.bf16.msra.mxu0 %v233
    %277 = vmatprep.subr.bf16.mxu0 0
    %278 = vmatpush1.bf16.msra.mxu0 %v234
    %279 = vmatprep.subr.bf16.mxu0 0
    %280 = vmatpush1.bf16.msra.mxu0 %v235
    %281 = vmatprep.subr.bf16.mxu0 0
    %282 = vmatpush1.bf16.msra.mxu0 %v236
    %283 = vmatprep.subr.bf16.mxu0 0
    %284 = vmatpush1.bf16.msra.mxu0 %v237
    %285 = vmatprep.subr.bf16.mxu0 0
    %286 = vmatpush1.bf16.msra.mxu0 %v238
    %287 = vmatprep.mubr.bf16.mxu0 %v119
    %288 = vmatmul.mubr.bf16.gmra.mrb[0].mxu0 %v118
    %v289 = vpop.f32.mrb[0].mxu0
    %v290 = vadd.f32 %v157, %v289
    %v291 = vpop.f32.mrb[0].mxu0
    %v292 = vpop.f32.mrb[0].mxu0
    %v293 = vadd.f32 %v157, %v292
    %v294 = vpop.f32.mrb[0].mxu0
    %295 = vdwg.mxu0
    %v296 = vadd.f32 %v290, %v28
    %v297 = vadd.f32 %v293, %v29
    %v298 = vsel %vm67, %v296, 0.0
    %299 = vadd.xlane.f32.xlu0 %v298
    %v300 = vpop.xlane.xlu0 %299
    %v301 = vsel %vm67, %v297, 0.0
    %302 = vadd.xlane.f32.xlu0 %v301
    %v303 = vpop.xlane.xlu0 %302
    %v304 = vmul.f32 %v300, 0.03125
    %v305 = vmul.f32 %v303, 0.03125
    %v306 = vsub.f32 %v296, %v304
    %v307 = vsub.f32 %v297, %v305
    %v308 = vmul.f32 %v306, %v306
    %v309 = vmul.f32 %v307, %v307
    %v310 = vsel %vm67, %v308, 0.0
    %311 = vadd.xlane.f32.xlu0 %v310
    %v312 = vpop.xlane.xlu0 %311
    %v313 = vsel %vm67, %v309, 0.0
    %314 = vadd.xlane.f32.xlu0 %v313
    %v315 = vpop.xlane.xlu0 %314
    %v316 = vmul.f32 %v312, 0.032258064
    %v317 = vmul.f32 %v315, 0.032258064
    %v318 = vrsqrt.pop %v316
    %v319 = vmul.f32 %v316, %v318
    %vm320 = vcmp.eq.f32.partialorder %v316, inf
    %v321 = vsel %vm320, %v316, %v319
    %vm322 = vcmp.eq.f32.partialorder %v316, 0.0
    %v323 = vand.u32 %v316, 2147483648
    %v324 = vsel %vm322, %v323, %v321
    %v325 = vrsqrt.pop %v317
    %v326 = vmul.f32 %v317, %v325
    %vm327 = vcmp.eq.f32.partialorder %v317, inf
    %v328 = vsel %vm327, %v317, %v326
    %vm329 = vcmp.eq.f32.partialorder %v317, 0.0
    %v330 = vand.u32 %v317, 2147483648
    %v331 = vsel %vm329, %v330, %v328
    %v332 = vadd.f32 %v324, 1e-06
    %v333 = vadd.f32 %v331, 1e-06
    %v334 = vrcp.pop %v332
    %v335 = vrcp.pop %v333
    %v336 = vmul.f32 %v306, %v334
    %v337 = vmul.f32 %v307, %v335
    %v338 = vld [vmem:[%s5] sm:$0x1]
    %v340 = vlaneseq
    %v341 = vshrl.u32 %v340, 7
    %v342 = vsub.s32 0, %v341
    %v343 = vrot.slane %v338, %v342
    %v345 = vmul.f32 %v343, %v336
    %v346 = vmul.f32 %v343, %v337
    %v347 = vld [vmem:[%s6] sm:$0x1]
    %v349 = vlaneseq
    %v350 = vshrl.u32 %v349, 7
    %v351 = vsub.s32 0, %v350
    %v352 = vrot.slane %v347, %v351
    %v354 = vadd.f32 %v345, %v352
    %v355 = vadd.f32 %v346, %v352
    %356 = vst.msk [vmem:[#allocation2] sm:$0xff] %vm67, %v354
    %357 = vst.msk [vmem:[#allocation2 + $0x8] sm:$0xff] %vm67, %v355
    // Predicated region
    $region30: #{tpu_custom_call.1} parent=1 // pred_check
      _
    $region31: #{tpu_custom_call.1} parent=1 // pred_check_branch
      %359 = sbr.rel (0) target = $region33
    $region32: #{tpu_custom_call.1} parent=1 // pred_region
      %s361 = ssub.s32 256, 256
      %362 = vsyncadd [#allocation3], %s361
      %s363 = sshll.u32 [#allocation2], 4
      %s364 = int_to_ptr.vmem [resolvable:$true] %s363
      %369 = dma.vmem_to_hbm [thread:$0]  %s364, 256, %s7, [#allocation3], 128, 128, 8
    $region33: #{tpu_custom_call.1} parent=1 // pred_fallthru
      _
    // Predicated region
    $region34: #{tpu_custom_call.1} parent=1 // pred_check
      _
    $region35: #{tpu_custom_call.1} parent=1 // pred_check_branch
      %371 = sbr.rel (0) target = $region37
    $region36: #{tpu_custom_call.1} parent=1 // pred_region
      %372 = dma.done [#allocation3], 256
    $region37: #{tpu_custom_call.1} parent=1 // pred_fallthru
      _
    %373 = vsyncpa [#allocation3], 1

</llo_original>
